<compile_context>
chip_gen: v7x
topology: tpu7x:2x2x1
jax: 0.10.0
libtpu: 0.0.40
codegen_flags: <defaults>
</compile_context>

<pallas_src>
import jax
import jax.numpy as jnp
from jax.experimental import pallas as pl
from jax.experimental.pallas import tpu as pltpu


def _round_up(x, m):
    return ((x + m - 1) // m) * m


def _cdiv(a, b):
    return -(-a // b)


# ----------------------------------------------------------------------------
# Hardware-aware helpers
# ----------------------------------------------------------------------------
def _vmem_limit_bytes():
    """Generation-aware VMEM budget: v5e/v6e have 128 MiB physical VMEM
    (use up to 64 MiB scoped), v7x only 64 MiB per core (cap ~28 MiB)."""
    try:
        cap = int(pltpu.get_tpu_info().vmem_capacity_bytes)
    except Exception:
        return 32 * 1024 * 1024
    if cap >= 100 * 1024 * 1024:
        return 64 * 1024 * 1024
    return 28 * 1024 * 1024


def _preferred_matmul_align(dim):
    """128 unless the true dim already exceeds 128 and a 256-wide MXU
    (v6e/v7x) can be confirmed; v5e's 4x128x128 MXU prefers 128."""
    if dim <= 128:
        return 128
    try:
        info = pltpu.get_tpu_info()
        for attr in ("mxu_column_size", "mxu_contracting_size", "mxu_size"):
            v = getattr(info, attr, None)
            if v is not None and int(v) >= 256:
                return 256
    except Exception:
        pass
    return 128


_BUFFERED_WEIGHT_SUPPORT = None


def _buffered_weight_supported():
    """One-time capability probe: does this JAX build accept
    pipeline_mode=pl.Buffered(1) on a constant-weight BlockSpec?  Probing a
    tiny throwaway kernel (compile only) avoids a broad try/except around the
    real kernel that could mask genuine lowering errors."""
    global _BUFFERED_WEIGHT_SUPPORT
    if _BUFFERED_WEIGHT_SUPPORT is None:
        try:
            w_spec = pl.BlockSpec((8, 128), lambda i: (0, 0),
                                  pipeline_mode=pl.Buffered(1))

            def _probe(x_ref, w_ref, o_ref):
                o_ref[...] = x_ref[...] + w_ref[...]

            fn = pl.pallas_call(
                _probe,
                out_shape=jax.ShapeDtypeStruct((8, 128), jnp.float32),
                grid_spec=pltpu.PrefetchScalarGridSpec(
                    num_scalar_prefetch=0,
                    grid=(1,),
                    in_specs=[pl.BlockSpec((8, 128), lambda i: (0, 0)), w_spec],
                    out_specs=pl.BlockSpec((8, 128), lambda i: (0, 0)),
                ),
            )
            z = jnp.zeros((8, 128), jnp.float32)
            jax.jit(fn).lower(z, z).compile()
            _BUFFERED_WEIGHT_SUPPORT = True
        except Exception:
            _BUFFERED_WEIGHT_SUPPORT = False
    return _BUFFERED_WEIGHT_SUPPORT


def _const_weight_spec(shape, single_buffer):
    """Weights are grid-invariant: a single VMEM buffer suffices (halves the
    weight VMEM footprint; matters most on v7x's 64 MiB VMEM)."""
    if single_buffer:
        return pl.BlockSpec(shape, lambda i: (0, 0), pipeline_mode=pl.Buffered(1))
    return pl.BlockSpec(shape, lambda i: (0, 0))


# ----------------------------------------------------------------------------
# Glue: bilinear interpolation (align_corners=True), NHWC layout
# ----------------------------------------------------------------------------
def bilinear_align_corners_nhwc(x, out_h, out_w):
    """x: (N, H, W, C) -> (N, out_h, out_w, C), bilinear, align_corners=True."""
    n, h, w, c = x.shape
    if (h, w) == (out_h, out_w):
        return x
    ys = jnp.linspace(0.0, h - 1.0, out_h) if out_h > 1 else jnp.zeros((1,))
    xs = jnp.linspace(0.0, w - 1.0, out_w) if out_w > 1 else jnp.zeros((1,))
    y0 = jnp.floor(ys).astype(jnp.int32)
    x0 = jnp.floor(xs).astype(jnp.int32)
    y1 = jnp.minimum(y0 + 1, h - 1)
    x1 = jnp.minimum(x0 + 1, w - 1)
    wy = (ys - y0.astype(ys.dtype))[None, :, None, None]   # (1, out_h, 1, 1)
    wx = (xs - x0.astype(xs.dtype))[None, None, :, None]   # (1, 1, out_w, 1)

    def gather(yi, xi):
        return x[:, yi][:, :, xi]                           # (N, out_h, out_w, C)

    top = gather(y0, x0) * (1.0 - wx) + gather(y0, x1) * wx
    bot = gather(y1, x0) * (1.0 - wx) + gather(y1, x1) * wx
    return top * (1.0 - wy) + bot * wy


# ----------------------------------------------------------------------------
# Pallas kernel: per-stage L2-normalize (packed lanes) -> fused block-diagonal
#                proj_mid matmul + ReLU -> proj_out matmul -> bf16 store
# ----------------------------------------------------------------------------
def _make_projection_kernel(stage_slices, normalize):
    """stage_slices: static (lane_offset, n_channels) per stage inside the
    packed channel axis."""
    def kernel(x_ref, w1_ref, w2_ref, o_ref):
        x = x_ref[...]                                       # (tp, C_pad) bf16
        if normalize:
            # Per-stage F.normalize(feat, dim=channels) on the packed lanes:
            # x_i / max(||x_i||, 1e-12) == x_i * rsqrt(max(sum(x_i^2), 1e-24)).
            # rsqrt runs on the EUP (otherwise idle); masked lane reductions
            # go to the XLU.  Padded lanes/rows are zero -> output zero.
            xf = x.astype(jnp.float32)
            x2 = xf * xf
            lane = jax.lax.broadcasted_iota(jnp.int32, (1, xf.shape[1]), 1)
            scale = None
            for off, c in stage_slices:
                m = ((lane >= off) & (lane < off + c)).astype(jnp.float32)
                ss = jnp.sum(x2 * m, axis=-1, keepdims=True)       # (tp, 1)
                inv = jax.lax.rsqrt(jnp.maximum(ss, 1e-24))        # (tp, 1)
                contrib = inv * m                                  # (tp, C_pad)
                scale = contrib if scale is None else scale + contrib
            x = (xf * scale).astype(jnp.bfloat16)
        # Fused first layer: the block-diagonal W1 emits every stage's
        # proj_mid output already concatenated along lanes -> ONE MXU matmul,
        # no in-VMEM concat copy.
        h = jnp.dot(x, w1_ref[...], preferred_element_type=jnp.float32)
        h = jnp.maximum(h, 0.0).astype(jnp.bfloat16)               # ReLU
        o_ref[...] = jnp.dot(h, w2_ref[...],
                             preferred_element_type=jnp.float32
                             ).astype(o_ref.dtype)                 # bf16 store
    return kernel


def _choose_tiling(p, c_pad, mcat_pad, o_pad, weight_bytes, budget,
                   single_buffer_weights, max_tile_rows=1024):
    """Pick (tile_rows, grid_steps): 128-aligned row tiles as large as the VMEM
    budget allows (tile 512+ ~85% of HBM roofline, amortizes per-step overhead
    on bandwidth-starved v5e) and an even (>=2) grid-step count when possible
    so v7x's two TensorCores stay balanced."""
    groups = _cdiv(p, 128)                        # 128-row groups of real rows

    def step_vmem(rows):
        act_in = 2 * rows * c_pad * 2             # bf16 slab, double-buffered
        act_out = 2 * rows * o_pad * 2            # bf16 output, double-buffered
        w = weight_bytes * (1 if single_buffer_weights else 2)
        # in-kernel f32 intermediates: upcast input + per-lane scale,
        # first/second matmul f32 accumulators.
        scratch = rows * (2 * c_pad + mcat_pad + o_pad) * 4
        return act_in + act_out + w + scratch

    gpt = max(1, min(groups, max_tile_rows // 128))
    while gpt > 1 and step_vmem(gpt * 128) > budget:
        gpt -= 1
    steps = _cdiv(groups, gpt)
    if groups >= 2 and steps % 2 == 1:
        gpt2 = _cdiv(groups, steps + 1)
        if gpt2 >= 1 and _cdiv(groups, gpt2) % 2 == 0:
            gpt = gpt2
            steps = _cdiv(groups, gpt2)
    return gpt * 128, steps


def projection_pallas(feats_flat, w1, w2, *, normalize, stage_slices, out_dim,
                      max_tile_rows=1024):
    """feats_flat: list of (P, C_i) bf16 row matrices (true channels, unpadded).
       w1:         (C_pad, Mcat_pad) bf16 block-diagonal fused proj_mid weight.
       w2:         (Mcat_pad, O_pad) bf16 proj_out weight.
       Returns     (P, out_dim) bf16."""
    num_stages = len(feats_flat)
    p = feats_flat[0].shape[0]
    c_tot = sum(int(f.shape[1]) for f in feats_flat)
    c_pad, mcat_pad = w1.shape
    o_pad = w2.shape[1]

    single_buf = _buffered_weight_supported()
    vmem_limit = _vmem_limit_bytes()
    weight_bytes = (int(w1.size) + int(w2.size)) * 2

    tile_p, steps = _choose_tiling(
        p, c_pad, mcat_pad, o_pad, weight_bytes,
        budget=int(vmem_limit * 0.75),
        single_buffer_weights=single_buf,
        max_tile_rows=max_tile_rows)
    p_pad = tile_p * steps

    # Build the lane-packed activation slab in ONE fused XLA op:
    # channel concat + lane pad (to c_pad) + row pad (to p_pad).
    slab = feats_flat[0] if num_stages == 1 else jnp.concatenate(feats_flat, -1)
    slab = jnp.pad(slab, ((0, p_pad - p), (0, c_pad - c_tot)))

    kernel = _make_projection_kernel(stage_slices, normalize)

    cost = pl.CostEstimate(
        flops=2 * p_pad * (c_pad * mcat_pad + mcat_pad * o_pad),
        transcendentals=p_pad * num_stages if normalize else 0,
        bytes_accessed=(p_pad * c_pad + p_pad * o_pad) * 2 + weight_bytes)

    out = pl.pallas_call(
        kernel,
        out_shape=jax.ShapeDtypeStruct((p_pad, o_pad), jnp.bfloat16),
        grid_spec=pltpu.PrefetchScalarGridSpec(
            num_scalar_prefetch=0,
            grid=(steps,),
            in_specs=[pl.BlockSpec((tile_p, c_pad), lambda i: (i, 0)),
                      _const_weight_spec(w1.shape, single_buf),
                      _const_weight_spec(w2.shape, single_buf)],
            out_specs=pl.BlockSpec((tile_p, o_pad), lambda i: (i, 0)),
        ),
        compiler_params=pltpu.CompilerParams(
            dimension_semantics=("parallel",),
            vmem_limit_bytes=vmem_limit,
        ),
        cost_estimate=cost,
    )(slab, w1, w2)
    return out[:p, :out_dim]


# ----------------------------------------------------------------------------
# ProjectionModel (training path) built around the Pallas kernel
# ----------------------------------------------------------------------------
class ProjectionModelPallas:
    def __init__(self, key, base_stage_dims, proj_mid_dims, proj_out_dims,
                 num_classes=10, sync_scale=-1, normalize=True):
        self.base_stage_dims = list(base_stage_dims)
        self.proj_mid_dims = proj_mid_dims
        self.proj_out_dims = proj_out_dims
        self.sync_scale = sync_scale
        self.normalize = normalize
        num_stages = len(base_stage_dims)

        keys = jax.random.split(key, num_stages + 4)

        # f32 master weights (transposed 1x1-conv weights): (Cin, M) / (S*M, O)
        self.w_mids = []
        for i, cin in enumerate(base_stage_dims):
            bound = cin ** -0.5
            self.w_mids.append(jax.random.uniform(
                keys[i], (cin, proj_mid_dims), jnp.float32, -bound, bound))
        cin_out = proj_mid_dims * num_stages
        bound = cin_out ** -0.5
        self.w_out = jax.random.uniform(
            keys[-4], (cin_out, proj_out_dims), jnp.float32, -bound, bound)

        # Packed / padded bf16 weights for the Pallas kernel.
        c_tot = sum(base_stage_dims)
        self.c_pad = _round_up(c_tot, 128)
        m_cat = proj_mid_dims * num_stages
        self.m_cat_pad = _round_up(m_cat, _preferred_matmul_align(m_cat))
        self.o_pad = _round_up(proj_out_dims,
                               _preferred_matmul_align(proj_out_dims))

        # Static lane slices of each stage inside the packed channel axis.
        offs, off = [], 0
        for c in base_stage_dims:
            offs.append((off, c))
            off += c
        self.stage_slices = tuple(offs)

        # Block-diagonal fused proj_mid weight: stage i's (C_i, M) block sits
        # at rows [off_i, off_i+C_i) and columns [i*M, (i+1)*M).
        w1 = jnp.zeros((self.c_pad, self.m_cat_pad), jnp.bfloat16)
        for i, ((o_, c), wm) in enumerate(zip(self.stage_slices, self.w_mids)):
            w1 = w1.at[o_:o_ + c,
                       i * proj_mid_dims:(i + 1) * proj_mid_dims].set(
                wm.astype(jnp.bfloat16))
        self.w1 = w1

        # proj_out weight, tightly packed mid columns (matches torch.cat order).
        w2 = jnp.zeros((self.m_cat_pad, self.o_pad), jnp.bfloat16)
        w2 = w2.at[:m_cat, :proj_out_dims].set(self.w_out.astype(jnp.bfloat16))
        self.w2 = w2

        # Synthetic "base" stub parameters (plain JAX glue).
        self.w_stem0 = jax.random.normal(keys[-3], (3, base_stage_dims[0])) * 0.1
        self.w_stem1 = jax.random.normal(
            keys[-2], (base_stage_dims[0], base_stage_dims[1])) * 0.1
        self.w_cls = jax.random.normal(
            keys[-1], (base_stage_dims[1], num_classes)) * 0.1

    # ---- synthetic base: returns (logit, [stage0, stage1]) in NHWC ----------
    def _base(self, image_nchw):
        x = jnp.transpose(image_nchw, (0, 2, 3, 1))          # (N, H, W, 3)
        s0 = jnp.maximum(jnp.einsum('nhwc,cd->nhwd', x, self.w_stem0), 0.0)
        n, h, w, c0 = s0.shape
        pooled = s0.reshape(n, h // 2, 2, w // 2, 2, c0).mean(axis=(2, 4))
        s1 = jnp.maximum(jnp.einsum('nhwc,cd->nhwd', pooled, self.w_stem1), 0.0)
        logit = s1.mean(axis=(1, 2)) @ self.w_cls             # GAP head
        return logit, [s0, s1]

    # ---- forward (training path): (logit, proj) -----------------------------
    def forward(self, image):
        logit, feats = self._base(image)                      # NHWC stage feats
        sync_h, sync_w = feats[self.sync_scale].shape[1:3]
        feats = [bilinear_align_corners_nhwc(f, sync_h, sync_w) for f in feats]

        n = image.shape[0]
        p = n * sync_h * sync_w
        # (N,H,W,C_i) -> (P, C_i) bf16 with TRUE channel counts only; the
        # lane + row padding is fused into one op inside projection_pallas.
        feats_flat = [f.reshape(p, f.shape[-1]).astype(jnp.bfloat16)
                      for f in feats]

        proj_flat = projection_pallas(
            feats_flat, self.w1, self.w2,
            normalize=self.normalize, stage_slices=self.stage_slices,
            out_dim=self.proj_out_dims)                        # (P, O) bf16

        proj = proj_flat.reshape(n, sync_h, sync_w, self.proj_out_dims)
        # PyTorch Conv2d output is NCHW float32; this slice/reshape/transpose/
        # cast chain only touches the real-sized (unpadded) output.
        return logit, jnp.transpose(proj, (0, 3, 1, 2)).astype(jnp.float32)

    # ---- pure-JAX f32 reference (PyTorch-faithful semantics) ----------------
    def forward_reference(self, image):
        logit, feats = self._base(image)
        sync_h, sync_w = feats[self.sync_scale].shape[1:3]
        feats = [bilinear_align_corners_nhwc(f, sync_h, sync_w) for f in feats]
        if self.normalize:
            feats = [f / jnp.maximum(
                jnp.sqrt(jnp.sum(f * f, axis=-1, keepdims=True)), 1e-12)
                for f in feats]
        mids = [jnp.maximum(jnp.einsum('nhwc,cm->nhwm', f, wm), 0.0)
                for f, wm in zip(feats, self.w_mids)]
        cat = jnp.concatenate(mids, axis=-1)
        proj = jnp.einsum('nhwc,co->nhwo', cat, self.w_out)
        return logit, jnp.transpose(proj, (0, 3, 1, 2))

    # ---- pure-JAX reference matching the kernel's bf16 dtype path -----------
    def forward_reference_bf16(self, image):
        logit, feats = self._base(image)
        sync_h, sync_w = feats[self.sync_scale].shape[1:3]
        feats = [bilinear_align_corners_nhwc(f, sync_h, sync_w) for f in feats]
        hs = []
        for f, wm in zip(feats, self.w_mids):
            x = f.astype(jnp.bfloat16).astype(jnp.float32)
            if self.normalize:
                x = x * jax.lax.rsqrt(
                    jnp.maximum(jnp.sum(x * x, axis=-1, keepdims=True), 1e-24))
            h = jnp.einsum('nhwc,cm->nhwm', x.astype(jnp.bfloat16),
                           wm.astype(jnp.bfloat16),
                           preferred_element_type=jnp.float32)
            hs.append(jnp.maximum(h, 0.0).astype(jnp.bfloat16))
        cat = jnp.concatenate(hs, axis=-1)
        proj = jnp.einsum('nhwc,co->nhwo', cat, self.w_out.astype(jnp.bfloat16),
                          preferred_element_type=jnp.float32
                          ).astype(jnp.bfloat16)               # mirror bf16 store
        return logit, jnp.transpose(proj, (0, 3, 1, 2)).astype(jnp.float32)


# ----------------------------------------------------------------------------
if __name__ == "__main__":
    key = jax.random.PRNGKey(0)
    k_img, k_params = jax.random.split(key)

    # small shapes: batch=2, 3-channel 16x16 image
    image = jax.random.normal(k_img, (2, 3, 16, 16), jnp.float32)

    model = ProjectionModelPallas(
        k_params,
        base_stage_dims=[8, 16],   # stage0: 8ch @16x16, stage1: 16ch @8x8
        proj_mid_dims=32,
        proj_out_dims=16,
        num_classes=10,
        sync_scale=-1,
        normalize=True,
    )

    logit, proj = model.forward(image)
    jax.block_until_ready((logit, proj))

    assert logit.shape == (2, 10), logit.shape
    assert proj.shape == (2, 16, 8, 8), proj.shape

    # Tight check against a reference that follows the same bf16 dot path.
    _, proj_bf16 = model.forward_reference_bf16(image)
    err_bf16 = float(jnp.max(jnp.abs(proj - proj_bf16)))
    assert err_bf16 < 1e-2, err_bf16

    # Loose sanity check against the full-f32 PyTorch-faithful reference
    # (bf16 matmul inputs / bf16 output introduce ~0.5% relative error).
    _, proj_f32 = model.forward_reference(image)
    err_f32 = float(jnp.max(jnp.abs(proj - proj_f32)))
    assert err_f32 < 5e-2, err_f32

    print("KERNEL_OK")
</pallas_src>

<mosaic_0001>
module attributes {stable_mosaic.version = 11 : i64} {
  func.func @kernel(%arg0: i32, %arg1: memref<128x128xbf16, #tpu.memory_space<vmem>>, %arg2: memref<128x128xbf16, #tpu.memory_space<vmem>>, %arg3: memref<128x128xbf16, #tpu.memory_space<vmem>>, %arg4: memref<128x128xbf16, #tpu.memory_space<vmem>>) attributes {dimension_semantics = [#tpu.dimension_semantics<parallel>], iteration_bounds = array<i64: 1>, scalar_prefetch = 0 : i64, scratch_operands = 0 : i64, tpu.core_type = #tpu.core_type<tc>, window_params = [{transform_indices = @transform_0, window_bounds = array<i64: 128, 128>}, {pipeline_mode = #tpu.pipeline_mode<synchronous>, transform_indices = @transform_1, window_bounds = array<i64: 128, 128>}, {pipeline_mode = #tpu.pipeline_mode<synchronous>, transform_indices = @transform_2, window_bounds = array<i64: 128, 128>}, {transform_indices = @transform_3, window_bounds = array<i64: 128, 128>}]} {
    %c0 = arith.constant 0 : index
    %c0_0 = arith.constant 0 : index
    %0 = vector.load %arg1[%c0, %c0_0] : memref<128x128xbf16, #tpu.memory_space<vmem>>, vector<128x128xbf16>
    %1 = arith.extf %0 : vector<128x128xbf16> to vector<128x128xf32>
    %2 = arith.mulf %1, %1 : vector<128x128xf32>
    %3 = tpu.iota {dimensions = array<i32: 1>} : vector<1x128xi32>
    %c0_i32 = arith.constant 0 : i32
    %4 = vector.broadcast %c0_i32 : i32 to vector<1x128xi32>
    %5 = arith.cmpi sge, %3, %4 : vector<1x128xi32>
    %c8_i32 = arith.constant 8 : i32
    %6 = vector.broadcast %c8_i32 : i32 to vector<1x128xi32>
    %7 = arith.cmpi slt, %3, %6 : vector<1x128xi32>
    %8 = arith.andi %5, %7 : vector<1x128xi1>
    %9 = arith.extui %8 : vector<1x128xi1> to vector<1x128xi32>
    %10 = arith.sitofp %9 : vector<1x128xi32> to vector<1x128xf32>
    %11 = vector.broadcast %10 : vector<1x128xf32> to vector<128x128xf32>
    %12 = arith.mulf %2, %11 : vector<128x128xf32>
    %cst = arith.constant dense<0.000000e+00> : vector<128xf32>
    %13 = vector.multi_reduction <add>, %12, %cst [1] : vector<128x128xf32> to vector<128xf32>
    %14 = vector.shape_cast %13 : vector<128xf32> to vector<128x1xf32>
    %cst_1 = arith.constant 1.000000e-24 : f32
    %15 = vector.broadcast %cst_1 : f32 to vector<128x1xf32>
    %16 = arith.maximumf %14, %15 : vector<128x1xf32>
    %17 = math.rsqrt %16 : vector<128x1xf32>
    %18 = vector.broadcast %17 : vector<128x1xf32> to vector<128x128xf32>
    %19 = vector.broadcast %10 : vector<1x128xf32> to vector<128x128xf32>
    %20 = arith.mulf %18, %19 : vector<128x128xf32>
    %c8_i32_2 = arith.constant 8 : i32
    %21 = vector.broadcast %c8_i32_2 : i32 to vector<1x128xi32>
    %22 = arith.cmpi sge, %3, %21 : vector<1x128xi32>
    %c24_i32 = arith.constant 24 : i32
    %23 = vector.broadcast %c24_i32 : i32 to vector<1x128xi32>
    %24 = arith.cmpi slt, %3, %23 : vector<1x128xi32>
    %25 = arith.andi %22, %24 : vector<1x128xi1>
    %26 = arith.extui %25 : vector<1x128xi1> to vector<1x128xi32>
    %27 = arith.sitofp %26 : vector<1x128xi32> to vector<1x128xf32>
    %28 = vector.broadcast %27 : vector<1x128xf32> to vector<128x128xf32>
    %29 = arith.mulf %2, %28 : vector<128x128xf32>
    %cst_3 = arith.constant dense<0.000000e+00> : vector<128xf32>
    %30 = vector.multi_reduction <add>, %29, %cst_3 [1] : vector<128x128xf32> to vector<128xf32>
    %31 = vector.shape_cast %30 : vector<128xf32> to vector<128x1xf32>
    %cst_4 = arith.constant 1.000000e-24 : f32
    %32 = vector.broadcast %cst_4 : f32 to vector<128x1xf32>
    %33 = arith.maximumf %31, %32 : vector<128x1xf32>
    %34 = math.rsqrt %33 : vector<128x1xf32>
    %35 = vector.broadcast %34 : vector<128x1xf32> to vector<128x128xf32>
    %36 = vector.broadcast %27 : vector<1x128xf32> to vector<128x128xf32>
    %37 = arith.mulf %35, %36 : vector<128x128xf32>
    %38 = arith.addf %20, %37 : vector<128x128xf32>
    %39 = arith.mulf %1, %38 : vector<128x128xf32>
    %40 = arith.truncf %39 : vector<128x128xf32> to vector<128x128xbf16>
    %c0_5 = arith.constant 0 : index
    %c0_6 = arith.constant 0 : index
    %41 = vector.load %arg2[%c0_5, %c0_6] : memref<128x128xbf16, #tpu.memory_space<vmem>>, vector<128x128xbf16>
    %cst_7 = arith.constant dense<0.000000e+00> : vector<128x128xf32>
    %42 = tpu.matmul %40, %41, %cst_7 {dimension_numbers = #tpu.dot_dimension_numbers<[1], [0], [0], [1], [0, 0, 1, 1], [], []>} : vector<128x128xbf16>, vector<128x128xbf16>, vector<128x128xf32> -> vector<128x128xf32>
    %cst_8 = arith.constant 0.000000e+00 : f32
    %43 = vector.broadcast %cst_8 : f32 to vector<128x128xf32>
    %44 = arith.maximumf %42, %43 : vector<128x128xf32>
    %45 = arith.truncf %44 : vector<128x128xf32> to vector<128x128xbf16>
    %c0_9 = arith.constant 0 : index
    %c0_10 = arith.constant 0 : index
    %46 = vector.load %arg3[%c0_9, %c0_10] : memref<128x128xbf16, #tpu.memory_space<vmem>>, vector<128x128xbf16>
    %cst_11 = arith.constant dense<0.000000e+00> : vector<128x128xf32>
    %47 = tpu.matmul %45, %46, %cst_11 {dimension_numbers = #tpu.dot_dimension_numbers<[1], [0], [0], [1], [0, 0, 1, 1], [], []>} : vector<128x128xbf16>, vector<128x128xbf16>, vector<128x128xf32> -> vector<128x128xf32>
    %48 = arith.truncf %47 : vector<128x128xf32> to vector<128x128xbf16>
    %c0_12 = arith.constant 0 : index
    %c0_13 = arith.constant 0 : index
    %49 = vector.load %arg4[%c0_12, %c0_13] : memref<128x128xbf16, #tpu.memory_space<vmem>>, vector<128x128xbf16>
    tpu.vector_store %arg4[%c0_12, %c0_13], %48 {strides = array<i32>} : memref<128x128xbf16, #tpu.memory_space<vmem>>, vector<128x128xbf16>,
    return
  }
  func.func @transform_0(%arg0: i32) -> (i32, i32) {
    %c0_i32 = arith.constant 0 : i32
    %c0_i32_0 = arith.constant 0 : i32
    return %arg0, %c0_i32 : i32, i32
  }
  func.func @transform_1(%arg0: i32) -> (i32, i32) {
    %c0_i32 = arith.constant 0 : i32
    %c0_i32_0 = arith.constant 0 : i32
    %c0_i32_1 = arith.constant 0 : i32
    return %c0_i32, %c0_i32_0 : i32, i32
  }
  func.func @transform_2(%arg0: i32) -> (i32, i32) {
    %c0_i32 = arith.constant 0 : i32
    %c0_i32_0 = arith.constant 0 : i32
    %c0_i32_1 = arith.constant 0 : i32
    return %c0_i32, %c0_i32_0 : i32, i32
  }
  func.func @transform_3(%arg0: i32) -> (i32, i32) {
    %c0_i32 = arith.constant 0 : i32
    %c0_i32_0 = arith.constant 0 : i32
    return %arg0, %c0_i32 : i32, i32
  }
}

</mosaic_0001>

<llo_original>
// kernel: tpu_custom_call.1
$region0: #{tpu_custom_call.1}
  #allocation0 [shape = 'u32[]', space=smem, size = 0x4, offset = 0x4, fixed_abs, tag = 'smem constant byte address 0x4 - core index']
  #allocation1 [shape = 'u32[144,128]{1,0:T(1,128)}', space=vmem, size = 0x12000, scoped, tag = 'internal scratch']
  %s0 = inlined_call_operand.hbm [shape: bf16[128,128], index: 0, kind: input, shape index: {}]
  %s1 = inlined_call_operand.hbm [shape: bf16[128,128], index: 1, kind: input, shape index: {}]
  %s2 = inlined_call_operand.hbm [shape: bf16[128,128], index: 2, kind: input, shape index: {}]
  %s3 = inlined_call_operand.hbm [shape: bf16[128,128], index: 3, kind: output, shape index: {}]
  %s4 = sld [smem:[#allocation0]]
  $region34: #{tpu_custom_call.1} parent=0
    _
  %s6 = ssub.s32 1, %s4
  %s7 = scalar_select 0, %s6, %s4
  $region1: #{tpu_custom_call.1} parent=0
    #allocation2 [shape = 'u8[32768]{0}', space=vmem, size = 0x8000, scoped, tag = 'input window, operand 0, single buffered']
    #allocation3 [shape = 's32[1]{0}', space=sflag, size = 0x4, scoped, tag = 'scoped memory for tpu_custom_call.1']
    #allocation4 [shape = 's32[1]{0}', space=sflag, size = 0x4, scoped, tag = 'scoped memory for tpu_custom_call.1']
    #allocation5 [shape = 'u8[32768]{0}', space=vmem, size = 0x8000, scoped, tag = 'input window, operand 1, single buffered']
    #allocation6 [shape = 's32[1]{0}', space=sflag, size = 0x4, scoped, tag = 'scoped memory for tpu_custom_call.1']
    #allocation7 [shape = 'u8[32768]{0}', space=vmem, size = 0x8000, scoped, tag = 'input window, operand 2, single buffered']
    #allocation8 [shape = 'u8[32768]{0}', space=vmem, size = 0x8000, scoped, tag = 'output window, operand 0, single buffered']
    %8 = vsyncpa [#allocation3], 0
    %9 = vsyncpa [#allocation6], 0
    %10 = vsyncpa [#allocation4], 0
    // Predicated region
    $region2: #{tpu_custom_call.1} parent=1 // pred_check
      _
    $region3: #{tpu_custom_call.1} parent=1 // pred_check_branch
      %12 = sbr.rel (0) target = $region5
    $region4: #{tpu_custom_call.1} parent=1 // pred_region
      %s14 = ssub.s32 1024, 1024
      %15 = vsyncadd [#allocation3], %s14
      %s16 = sshll.u32 [#allocation2], 4
      %s17 = int_to_ptr.vmem [resolvable:$true] %s16
      %22 = dma.hbm_to_vmem [thread:$0]  %s0, 1024, %s17, [#allocation3], 64, 64, 4
    $region5: #{tpu_custom_call.1} parent=1 // pred_fallthru
      _
    // Predicated region
    $region6: #{tpu_custom_call.1} parent=1 // pred_check
      _
    $region7: #{tpu_custom_call.1} parent=1 // pred_check_branch
      %24 = sbr.rel (0) target = $region9
    $region8: #{tpu_custom_call.1} parent=1 // pred_region
      %s26 = ssub.s32 1024, 1024
      %27 = vsyncadd [#allocation6], %s26
      %s28 = sshll.u32 [#allocation5], 4
      %s29 = int_to_ptr.vmem [resolvable:$true] %s28
      %34 = dma.hbm_to_vmem [thread:$0]  %s1, 1024, %s29, [#allocation6], 64, 64, 4
    $region9: #{tpu_custom_call.1} parent=1 // pred_fallthru
      _
    // Predicated region
    $region10: #{tpu_custom_call.1} parent=1 // pred_check
      _
    $region11: #{tpu_custom_call.1} parent=1 // pred_check_branch
      %36 = sbr.rel (0) target = $region13
    $region12: #{tpu_custom_call.1} parent=1 // pred_region
      %s38 = ssub.s32 1024, 1024
      %39 = vsyncadd [#allocation6], %s38
      %s40 = sshll.u32 [#allocation7], 4
      %s41 = int_to_ptr.vmem [resolvable:$true] %s40
      %46 = dma.hbm_to_vmem [thread:$0]  %s2, 1024, %s41, [#allocation6], 64, 64, 4
    $region13: #{tpu_custom_call.1} parent=1 // pred_fallthru
      _
    // Predicated region
    $region14: #{tpu_custom_call.1} parent=1 // pred_check
      _
    $region15: #{tpu_custom_call.1} parent=1 // pred_check_branch
      %48 = sbr.rel (0) target = $region17
    $region16: #{tpu_custom_call.1} parent=1 // pred_region
      %49 = dma.done [#allocation3], 1024
    $region17: #{tpu_custom_call.1} parent=1 // pred_fallthru
      _
    // Predicated region
    $region18: #{tpu_custom_call.1} parent=1 // pred_check
      _
    $region19: #{tpu_custom_call.1} parent=1 // pred_check_branch
      %51 = sbr.rel (0) target = $region21
    $region20: #{tpu_custom_call.1} parent=1 // pred_region
      %52 = dma.done [#allocation6], 1024
    $region21: #{tpu_custom_call.1} parent=1 // pred_fallthru
      _
    // Predicated region
    $region22: #{tpu_custom_call.1} parent=1 // pred_check
      _
    $region23: #{tpu_custom_call.1} parent=1 // pred_check_branch
      %54 = sbr.rel (0) target = $region25
    $region24: #{tpu_custom_call.1} parent=1 // pred_region
      %55 = dma.done [#allocation6], 1024
    $region25: #{tpu_custom_call.1} parent=1 // pred_fallthru
      _
    %v57 = vld [vmem:[#allocation2] sm:$0xf]
    %v58 = vld [vmem:[#allocation2 + $0x4] sm:$0xf]
    %v59 = vld [vmem:[#allocation2 + $0x8] sm:$0xf]
    %v60 = vld [vmem:[#allocation2 + $0xc] sm:$0xf]
    %v61 = vld [vmem:[#allocation2 + $0x10] sm:$0xf]
    %v62 = vld [vmem:[#allocation2 + $0x14] sm:$0xf]
    %v63 = vld [vmem:[#allocation2 + $0x18] sm:$0xf]
    %v64 = vld [vmem:[#allocation2 + $0x1c] sm:$0xf]
    %v65 = vld [vmem:[#allocation2 + $0x20] sm:$0xf]
    %v66 = vld [vmem:[#allocation2 + $0x24] sm:$0xf]
    %v67 = vld [vmem:[#allocation2 + $0x28] sm:$0xf]
    %v68 = vld [vmem:[#allocation2 + $0x2c] sm:$0xf]
    %v69 = vld [vmem:[#allocation2 + $0x30] sm:$0xf]
    %v70 = vld [vmem:[#allocation2 + $0x34] sm:$0xf]
    %v71 = vld [vmem:[#allocation2 + $0x38] sm:$0xf]
    %v72 = vld [vmem:[#allocation2 + $0x3c] sm:$0xf]
    %v73 = vunpack.c.l.bf16 %v57
    %v74 = vunpack.c.l.bf16 %v58
    %v75 = vunpack.c.l.bf16 %v59
    %v76 = vunpack.c.l.bf16 %v60
    %v77 = vunpack.c.l.bf16 %v61
    %v78 = vunpack.c.l.bf16 %v62
    %v79 = vunpack.c.l.bf16 %v63
    %v80 = vunpack.c.l.bf16 %v64
    %v81 = vunpack.c.l.bf16 %v65
    %v82 = vunpack.c.l.bf16 %v66
    %v83 = vunpack.c.l.bf16 %v67
    %v84 = vunpack.c.l.bf16 %v68
    %v85 = vunpack.c.l.bf16 %v69
    %v86 = vunpack.c.l.bf16 %v70
    %v87 = vunpack.c.l.bf16 %v71
    %v88 = vunpack.c.l.bf16 %v72
    %v89 = vmul.f32 %v73, %v73
    %v90 = vmul.f32 %v74, %v74
    %v91 = vmul.f32 %v75, %v75
    %v92 = vmul.f32 %v76, %v76
    %v93 = vmul.f32 %v77, %v77
    %v94 = vmul.f32 %v78, %v78
    %v95 = vmul.f32 %v79, %v79
    %v96 = vmul.f32 %v80, %v80
    %v97 = vmul.f32 %v81, %v81
    %v98 = vmul.f32 %v82, %v82
    %v99 = vmul.f32 %v83, %v83
    %v100 = vmul.f32 %v84, %v84
    %v101 = vmul.f32 %v85, %v85
    %v102 = vmul.f32 %v86, %v86
    %v103 = vmul.f32 %v87, %v87
    %v104 = vmul.f32 %v88, %v88
    %v105 = vlaneseq
    %v106 = vand.u32 %v105, 127
    %vm107 = vcmp.ge.s32.totalorder %v106, 0
    %vm108 = vcmp.lt.s32.totalorder %v106, 8
    %vm109 = vmand %vm107, %vm108
    %v110 = vsel %vm109, 1, 0
    %v111 = vcvt.s32.f32 %v110
    %v112 = vmul.f32 %v89, %v111
    %v113 = vmul.f32 %v90, %v111
    %v114 = vmul.f32 %v91, %v111
    %v115 = vmul.f32 %v92, %v111
    %v116 = vmul.f32 %v93, %v111
    %v117 = vmul.f32 %v94, %v111
    %v118 = vmul.f32 %v95, %v111
    %v119 = vmul.f32 %v96, %v111
    %v120 = vmul.f32 %v97, %v111
    %v121 = vmul.f32 %v98, %v111
    %v122 = vmul.f32 %v99, %v111
    %v123 = vmul.f32 %v100, %v111
    %v124 = vmul.f32 %v101, %v111
    %v125 = vmul.f32 %v102, %v111
    %v126 = vmul.f32 %v103, %v111
    %v127 = vmul.f32 %v104, %v111
    %128 = vadd.xlane.f32.xlu0 %v112
    %v129 = vpop.xlane.xlu0 %128
    %130 = vadd.xlane.f32.xlu0 %v113
    %v131 = vpop.xlane.xlu0 %130
    %132 = vadd.xlane.f32.xlu0 %v114
    %v133 = vpop.xlane.xlu0 %132
    %134 = vadd.xlane.f32.xlu0 %v115
    %v135 = vpop.xlane.xlu0 %134
    %136 = vadd.xlane.f32.xlu0 %v116
    %v137 = vpop.xlane.xlu0 %136
    %138 = vadd.xlane.f32.xlu0 %v117
    %v139 = vpop.xlane.xlu0 %138
    %140 = vadd.xlane.f32.xlu0 %v118
    %v141 = vpop.xlane.xlu0 %140
    %142 = vadd.xlane.f32.xlu0 %v119
    %v143 = vpop.xlane.xlu0 %142
    %144 = vadd.xlane.f32.xlu0 %v120
    %v145 = vpop.xlane.xlu0 %144
    %146 = vadd.xlane.f32.xlu0 %v121
    %v147 = vpop.xlane.xlu0 %146
    %148 = vadd.xlane.f32.xlu0 %v122
    %v149 = vpop.xlane.xlu0 %148
    %150 = vadd.xlane.f32.xlu0 %v123
    %v151 = vpop.xlane.xlu0 %150
    %152 = vadd.xlane.f32.xlu0 %v124
    %v153 = vpop.xlane.xlu0 %152
    %154 = vadd.xlane.f32.xlu0 %v125
    %v155 = vpop.xlane.xlu0 %154
    %156 = vadd.xlane.f32.xlu0 %v126
    %v157 = vpop.xlane.xlu0 %156
    %158 = vadd.xlane.f32.xlu0 %v127
    %v159 = vpop.xlane.xlu0 %158
    %v160 = vmax.f32 %v129, 1e-24
    %v161 = vmax.f32 %v131, 1e-24
    %v162 = vmax.f32 %v133, 1e-24
    %v163 = vmax.f32 %v135, 1e-24
    %v164 = vmax.f32 %v137, 1e-24
    %v165 = vmax.f32 %v139, 1e-24
    %v166 = vmax.f32 %v141, 1e-24
    %v167 = vmax.f32 %v143, 1e-24
    %v168 = vmax.f32 %v145, 1e-24
    %v169 = vmax.f32 %v147, 1e-24
    %v170 = vmax.f32 %v149, 1e-24
    %v171 = vmax.f32 %v151, 1e-24
    %v172 = vmax.f32 %v153, 1e-24
    %v173 = vmax.f32 %v155, 1e-24
    %v174 = vmax.f32 %v157, 1e-24
    %v175 = vmax.f32 %v159, 1e-24
    %v176 = vrsqrt.pop %v160
    %v177 = vrsqrt.pop %v161
    %v178 = vrsqrt.pop %v162
    %v179 = vrsqrt.pop %v163
    %v180 = vrsqrt.pop %v164
    %v181 = vrsqrt.pop %v165
    %v182 = vrsqrt.pop %v166
    %v183 = vrsqrt.pop %v167
    %v184 = vrsqrt.pop %v168
    %v185 = vrsqrt.pop %v169
    %v186 = vrsqrt.pop %v170
    %v187 = vrsqrt.pop %v171
    %v188 = vrsqrt.pop %v172
    %v189 = vrsqrt.pop %v173
    %v190 = vrsqrt.pop %v174
    %v191 = vrsqrt.pop %v175
    %v192 = vmul.f32 %v176, %v111
    %v193 = vmul.f32 %v177, %v111
    %v194 = vmul.f32 %v178, %v111
    %v195 = vmul.f32 %v179, %v111
    %v196 = vmul.f32 %v180, %v111
    %v197 = vmul.f32 %v181, %v111
    %v198 = vmul.f32 %v182, %v111
    %v199 = vmul.f32 %v183, %v111
    %v200 = vmul.f32 %v184, %v111
    %v201 = vmul.f32 %v185, %v111
    %v202 = vmul.f32 %v186, %v111
    %v203 = vmul.f32 %v187, %v111
    %v204 = vmul.f32 %v188, %v111
    %v205 = vmul.f32 %v189, %v111
    %v206 = vmul.f32 %v190, %v111
    %v207 = vmul.f32 %v191, %v111
    %vm208 = vcmp.ge.s32.totalorder %v106, 8
    %vm209 = vcmp.lt.s32.totalorder %v106, 24
    %vm210 = vmand %vm208, %vm209
    %v211 = vsel %vm210, 1, 0
    %v212 = vcvt.s32.f32 %v211
    %v213 = vmul.f32 %v89, %v212
    %v214 = vmul.f32 %v90, %v212
    %v215 = vmul.f32 %v91, %v212
    %v216 = vmul.f32 %v92, %v212
    %v217 = vmul.f32 %v93, %v212
    %v218 = vmul.f32 %v94, %v212
    %v219 = vmul.f32 %v95, %v212
    %v220 = vmul.f32 %v96, %v212
    %v221 = vmul.f32 %v97, %v212
    %v222 = vmul.f32 %v98, %v212
    %v223 = vmul.f32 %v99, %v212
    %v224 = vmul.f32 %v100, %v212
    %v225 = vmul.f32 %v101, %v212
    %v226 = vmul.f32 %v102, %v212
    %v227 = vmul.f32 %v103, %v212
    %v228 = vmul.f32 %v104, %v212
    %229 = vadd.xlane.f32.xlu0 %v213
    %v230 = vpop.xlane.xlu0 %229
    %231 = vadd.xlane.f32.xlu0 %v214
    %v232 = vpop.xlane.xlu0 %231
    %233 = vadd.xlane.f32.xlu0 %v215
    %v234 = vpop.xlane.xlu0 %233
    %235 = vadd.xlane.f32.xlu0 %v216
    %v236 = vpop.xlane.xlu0 %235
    %237 = vadd.xlane.f32.xlu0 %v217
    %v238 = vpop.xlane.xlu0 %237
    %239 = vadd.xlane.f32.xlu0 %v218
    %v240 = vpop.xlane.xlu0 %239
    %241 = vadd.xlane.f32.xlu0 %v219
    %v242 = vpop.xlane.xlu0 %241
    %243 = vadd.xlane.f32.xlu0 %v220
    %v244 = vpop.xlane.xlu0 %243
    %245 = vadd.xlane.f32.xlu0 %v221
    %v246 = vpop.xlane.xlu0 %245
    %247 = vadd.xlane.f32.xlu0 %v222
    %v248 = vpop.xlane.xlu0 %247
    %249 = vadd.xlane.f32.xlu0 %v223
    %v250 = vpop.xlane.xlu0 %249
    %251 = vadd.xlane.f32.xlu0 %v224
    %v252 = vpop.xlane.xlu0 %251
    %253 = vadd.xlane.f32.xlu0 %v225
    %v254 = vpop.xlane.xlu0 %253
    %255 = vadd.xlane.f32.xlu0 %v226
    %v256 = vpop.xlane.xlu0 %255
    %257 = vadd.xlane.f32.xlu0 %v227
    %v258 = vpop.xlane.xlu0 %257
    %259 = vadd.xlane.f32.xlu0 %v228
    %v260 = vpop.xlane.xlu0 %259
    %v261 = vmax.f32 %v230, 1e-24
    %v262 = vmax.f32 %v232, 1e-24
    %v263 = vmax.f32 %v234, 1e-24
    %v264 = vmax.f32 %v236, 1e-24
    %v265 = vmax.f32 %v238, 1e-24
    %v266 = vmax.f32 %v240, 1e-24
    %v267 = vmax.f32 %v242, 1e-24
    %v268 = vmax.f32 %v244, 1e-24
    %v269 = vmax.f32 %v246, 1e-24
    %v270 = vmax.f32 %v248, 1e-24
    %v271 = vmax.f32 %v250, 1e-24
    %v272 = vmax.f32 %v252, 1e-24
    %v273 = vmax.f32 %v254, 1e-24
    %v274 = vmax.f32 %v256, 1e-24
    %v275 = vmax.f32 %v258, 1e-24
    %v276 = vmax.f32 %v260, 1e-24
    %v277 = vrsqrt.pop %v261
    %v278 = vrsqrt.pop %v262
    %v279 = vrsqrt.pop %v263
    %v280 = vrsqrt.pop %v264
    %v281 = vrsqrt.pop %v265
    %v282 = vrsqrt.pop %v266
    %v283 = vrsqrt.pop %v267
    %v284 = vrsqrt.pop %v268
    %v285 = vrsqrt.pop %v269
    %v286 = vrsqrt.pop %v270
    %v287 = vrsqrt.pop %v271
    %v288 = vrsqrt.pop %v272
    %v289 = vrsqrt.pop %v273
    %v290 = vrsqrt.pop %v274
    %v291 = vrsqrt.pop %v275
    %v292 = vrsqrt.pop %v276
    %v293 = vmul.f32 %v277, %v212
    %v294 = vmul.f32 %v278, %v212
    %v295 = vmul.f32 %v279, %v212
    %v296 = vmul.f32 %v280, %v212
    %v297 = vmul.f32 %v281, %v212
    %v298 = vmul.f32 %v282, %v212
    %v299 = vmul.f32 %v283, %v212
    %v300 = vmul.f32 %v284, %v212
    %v301 = vmul.f32 %v285, %v212
    %v302 = vmul.f32 %v286, %v212
    %v303 = vmul.f32 %v287, %v212
    %v304 = vmul.f32 %v288, %v212
    %v305 = vmul.f32 %v289, %v212
    %v306 = vmul.f32 %v290, %v212
    %v307 = vmul.f32 %v291, %v212
    %v308 = vmul.f32 %v292, %v212
    %v309 = vadd.f32 %v192, %v293
    %v310 = vadd.f32 %v193, %v294
    %v311 = vadd.f32 %v194, %v295
    %v312 = vadd.f32 %v195, %v296
    %v313 = vadd.f32 %v196, %v297
    %v314 = vadd.f32 %v197, %v298
    %v315 = vadd.f32 %v198, %v299
    %v316 = vadd.f32 %v199, %v300
    %v317 = vadd.f32 %v200, %v301
    %v318 = vadd.f32 %v201, %v302
    %v319 = vadd.f32 %v202, %v303
    %v320 = vadd.f32 %v203, %v304
    %v321 = vadd.f32 %v204, %v305
    %v322 = vadd.f32 %v205, %v306
    %v323 = vadd.f32 %v206, %v307
    %v324 = vadd.f32 %v207, %v308
    %v325 = vmul.f32 %v73, %v309
    %v326 = vmul.f32 %v74, %v310
    %v327 = vmul.f32 %v75, %v311
    %v328 = vmul.f32 %v76, %v312
    %v329 = vmul.f32 %v77, %v313
    %v330 = vmul.f32 %v78, %v314
    %v331 = vmul.f32 %v79, %v315
    %v332 = vmul.f32 %v80, %v316
    %v333 = vmul.f32 %v81, %v317
    %v334 = vmul.f32 %v82, %v318
    %v335 = vmul.f32 %v83, %v319
    %v336 = vmul.f32 %v84, %v320
    %v337 = vmul.f32 %v85, %v321
    %v338 = vmul.f32 %v86, %v322
    %v339 = vmul.f32 %v87, %v323
    %v340 = vmul.f32 %v88, %v324
    %v341 = vpack.c.bf16 %v326, %v325
    %v342 = vpack.c.bf16 %v328, %v327
    %v343 = vpack.c.bf16 %v330, %v329
    %v344 = vpack.c.bf16 %v332, %v331
    %v345 = vpack.c.bf16 %v334, %v333
    %v346 = vpack.c.bf16 %v336, %v335
    %v347 = vpack.c.bf16 %v338, %v337
    %v348 = vpack.c.bf16 %v340, %v339
    %v349 = vld [vmem:[#allocation5] sm:$0xf]
    %v350 = vld [vmem:[#allocation5 + $0x4] sm:$0xf]
    %v351 = vld [vmem:[#allocation5 + $0x8] sm:$0xf]
    %v352 = vld [vmem:[#allocation5 + $0xc] sm:$0xf]
    %v353 = vld [vmem:[#allocation5 + $0x10] sm:$0xf]
    %v354 = vld [vmem:[#allocation5 + $0x14] sm:$0xf]
    %v355 = vld [vmem:[#allocation5 + $0x18] sm:$0xf]
    %v356 = vld [vmem:[#allocation5 + $0x1c] sm:$0xf]
    %v357 = vld [vmem:[#allocation5 + $0x20] sm:$0xf]
    %v358 = vld [vmem:[#allocation5 + $0x24] sm:$0xf]
    %v359 = vld [vmem:[#allocation5 + $0x28] sm:$0xf]
    %v360 = vld [vmem:[#allocation5 + $0x2c] sm:$0xf]
    %v361 = vld [vmem:[#allocation5 + $0x30] sm:$0xf]
    %v362 = vld [vmem:[#allocation5 + $0x34] sm:$0xf]
    %v363 = vld [vmem:[#allocation5 + $0x38] sm:$0xf]
    %v364 = vld [vmem:[#allocation5 + $0x3c] sm:$0xf]
    %v381 = vunpack.c.l.b16 %v349
    %v382 = vunpack.c.l.b16 %v350
    %v383 = vunpack.c.l.b16 %v351
    %v384 = vunpack.c.l.b16 %v352
    %v385 = vunpack.c.l.b16 %v353
    %v386 = vunpack.c.l.b16 %v354
    %v387 = vunpack.c.l.b16 %v355
    %v388 = vunpack.c.l.b16 %v356
    %v389 = vunpack.c.l.b16 %v357
    %v390 = vunpack.c.l.b16 %v358
    %v391 = vunpack.c.l.b16 %v359
    %v392 = vunpack.c.l.b16 %v360
    %v393 = vunpack.c.l.b16 %v361
    %v394 = vunpack.c.l.b16 %v362
    %v395 = vunpack.c.l.b16 %v363
    %v396 = vunpack.c.l.b16 %v364
    %v397 = vpack.c.b16 %v382, %v381
    %v398 = vpack.c.b16 %v384, %v383
    %v399 = vpack.c.b16 %v386, %v385
    %v400 = vpack.c.b16 %v388, %v387
    %v401 = vpack.c.b16 %v390, %v389
    %v402 = vpack.c.b16 %v392, %v391
    %v403 = vpack.c.b16 %v394, %v393
    %v404 = vpack.c.b16 %v396, %v395
    %413 = vmatprep.subr.bf16.mxu0 0
    %414 = vmatpush1.bf16.msra.mxu0 %v397
    %415 = vmatprep.subr.bf16.mxu0 0
    %416 = vmatpush1.bf16.msra.mxu0 %v398
    %417 = vmatprep.subr.bf16.mxu0 0
    %418 = vmatpush1.bf16.msra.mxu0 %v399
    %419 = vmatprep.subr.bf16.mxu0 0
    %420 = vmatpush1.bf16.msra.mxu0 %v400
    %421 = vmatprep.subr.bf16.mxu0 0
    %422 = vmatpush1.bf16.msra.mxu0 %v401
    %423 = vmatprep.subr.bf16.mxu0 0
    %424 = vmatpush1.bf16.msra.mxu0 %v402
    %425 = vmatprep.subr.bf16.mxu0 0
    %426 = vmatpush1.bf16.msra.mxu0 %v403
    %427 = vmatprep.subr.bf16.mxu0 0
    %428 = vmatpush1.bf16.msra.mxu0 %v404
    %429 = vmatprep.subr.bf16.mxu0 0
    %430 = vmatpush1.bf16.msra.mxu0 0
    %431 = vmatprep.subr.bf16.mxu0 0
    %432 = vmatpush1.bf16.msra.mxu0 0
    %433 = vmatprep.subr.bf16.mxu0 0
    %434 = vmatpush1.bf16.msra.mxu0 0
    %435 = vmatprep.subr.bf16.mxu0 0
    %436 = vmatpush1.bf16.msra.mxu0 0
    %437 = vmatprep.subr.bf16.mxu0 0
    %438 = vmatpush1.bf16.msra.mxu0 0
    %439 = vmatprep.subr.bf16.mxu0 0
    %440 = vmatpush1.bf16.msra.mxu0 0
    %441 = vmatprep.subr.bf16.mxu0 0
    %442 = vmatpush1.bf16.msra.mxu0 0
    %443 = vmatprep.subr.bf16.mxu0 0
    %444 = vmatpush1.bf16.msra.mxu0 0
    %445 = vmatprep.mubr.bf16.mxu0 0
    %446 = vmatmul.mubr.bf16.gmra.mrb[0].mxu0 %v341
    %v447 = vpop.f32.mrb[0].mxu0
    %v448 = vadd.f32 0.0, %v447
    %v449 = vpop.f32.mrb[0].mxu0
    %v450 = vpop.f32.mrb[0].mxu0
    %v451 = vadd.f32 0.0, %v450
    %v452 = vpop.f32.mrb[0].mxu0
    %453 = vmatprep.mubr.bf16.mxu0 0
    %454 = vmatmul.mubr.bf16.gmra.mrb[0].mxu0 %v342
    %v455 = vpop.f32.mrb[0].mxu0
    %v456 = vadd.f32 0.0, %v455
    %v457 = vpop.f32.mrb[0].mxu0
    %v458 = vpop.f32.mrb[0].mxu0
    %v459 = vadd.f32 0.0, %v458
    %v460 = vpop.f32.mrb[0].mxu0
    %461 = vmatprep.mubr.bf16.mxu0 0
    %462 = vmatmul.mubr.bf16.gmra.mrb[0].mxu0 %v343
    %v463 = vpop.f32.mrb[0].mxu0
    %v464 = vadd.f32 0.0, %v463
    %v465 = vpop.f32.mrb[0].mxu0
    %v466 = vpop.f32.mrb[0].mxu0
    %v467 = vadd.f32 0.0, %v466
    %v468 = vpop.f32.mrb[0].mxu0
    %469 = vmatprep.mubr.bf16.mxu0 0
    %470 = vmatmul.mubr.bf16.gmra.mrb[0].mxu0 %v344
    %v471 = vpop.f32.mrb[0].mxu0
    %v472 = vadd.f32 0.0, %v471
    %v473 = vpop.f32.mrb[0].mxu0
    %v474 = vpop.f32.mrb[0].mxu0
    %v475 = vadd.f32 0.0, %v474
    %v476 = vpop.f32.mrb[0].mxu0
    %477 = vmatprep.mubr.bf16.mxu0 0
    %478 = vmatmul.mubr.bf16.gmra.mrb[0].mxu0 %v345
    %v479 = vpop.f32.mrb[0].mxu0
    %v480 = vadd.f32 0.0, %v479
    %v481 = vpop.f32.mrb[0].mxu0
    %v482 = vpop.f32.mrb[0].mxu0
    %v483 = vadd.f32 0.0, %v482
    %v484 = vpop.f32.mrb[0].mxu0
    %485 = vmatprep.mubr.bf16.mxu0 0
    %486 = vmatmul.mubr.bf16.gmra.mrb[0].mxu0 %v346
    %v487 = vpop.f32.mrb[0].mxu0
    %v488 = vadd.f32 0.0, %v487
    %v489 = vpop.f32.mrb[0].mxu0
    %v490 = vpop.f32.mrb[0].mxu0
    %v491 = vadd.f32 0.0, %v490
    %v492 = vpop.f32.mrb[0].mxu0
    %493 = vmatprep.mubr.bf16.mxu0 0
    %494 = vmatmul.mubr.bf16.gmra.mrb[0].mxu0 %v347
    %v495 = vpop.f32.mrb[0].mxu0
    %v496 = vadd.f32 0.0, %v495
    %v497 = vpop.f32.mrb[0].mxu0
    %v498 = vpop.f32.mrb[0].mxu0
    %v499 = vadd.f32 0.0, %v498
    %v500 = vpop.f32.mrb[0].mxu0
    %501 = vmatprep.mubr.bf16.mxu0 0
    %502 = vmatmul.mubr.bf16.gmra.mrb[0].mxu0 %v348
    %v503 = vpop.f32.mrb[0].mxu0
    %v504 = vadd.f32 0.0, %v503
    %v505 = vpop.f32.mrb[0].mxu0
    %v506 = vpop.f32.mrb[0].mxu0
    %v507 = vadd.f32 0.0, %v506
    %v508 = vpop.f32.mrb[0].mxu0
    %509 = vdwg.mxu0
    %v510 = vmax.f32 %v448, 0.0
    %v511 = vmax.f32 %v451, 0.0
    %v512 = vmax.f32 %v456, 0.0
    %v513 = vmax.f32 %v459, 0.0
    %v514 = vmax.f32 %v464, 0.0
    %v515 = vmax.f32 %v467, 0.0
    %v516 = vmax.f32 %v472, 0.0
    %v517 = vmax.f32 %v475, 0.0
    %v518 = vmax.f32 %v480, 0.0
    %v519 = vmax.f32 %v483, 0.0
    %v520 = vmax.f32 %v488, 0.0
    %v521 = vmax.f32 %v491, 0.0
    %v522 = vmax.f32 %v496, 0.0
    %v523 = vmax.f32 %v499, 0.0
    %v524 = vmax.f32 %v504, 0.0
    %v525 = vmax.f32 %v507, 0.0
    %v526 = vpack.c.bf16 %v511, %v510
    %v527 = vpack.c.bf16 %v513, %v512
    %v528 = vpack.c.bf16 %v515, %v514
    %v529 = vpack.c.bf16 %v517, %v516
    %v530 = vpack.c.bf16 %v519, %v518
    %v531 = vpack.c.bf16 %v521, %v520
    %v532 = vpack.c.bf16 %v523, %v522
    %v533 = vpack.c.bf16 %v525, %v524
    %v534 = vld [vmem:[#allocation7] sm:$0xf]
    %v535 = vld [vmem:[#allocation7 + $0x4] sm:$0xf]
    %v536 = vld [vmem:[#allocation7 + $0x8] sm:$0xf]
    %v537 = vld [vmem:[#allocation7 + $0xc] sm:$0xf]
    %v538 = vld [vmem:[#allocation7 + $0x10] sm:$0xf]
    %v539 = vld [vmem:[#allocation7 + $0x14] sm:$0xf]
    %v540 = vld [vmem:[#allocation7 + $0x18] sm:$0xf]
    %v541 = vld [vmem:[#allocation7 + $0x1c] sm:$0xf]
    %v542 = vld [vmem:[#allocation7 + $0x20] sm:$0xf]
    %v543 = vld [vmem:[#allocation7 + $0x24] sm:$0xf]
    %v544 = vld [vmem:[#allocation7 + $0x28] sm:$0xf]
    %v545 = vld [vmem:[#allocation7 + $0x2c] sm:$0xf]
    %v546 = vld [vmem:[#allocation7 + $0x30] sm:$0xf]
    %v547 = vld [vmem:[#allocation7 + $0x34] sm:$0xf]
    %v548 = vld [vmem:[#allocation7 + $0x38] sm:$0xf]
    %v549 = vld [vmem:[#allocation7 + $0x3c] sm:$0xf]
    %v566 = vunpack.c.l.b16 %v534
    %v567 = vunpack.c.l.b16 %v535
    %v568 = vunpack.c.l.b16 %v536
    %v569 = vunpack.c.l.b16 %v537
    %v570 = vunpack.c.l.b16 %v538
    %v571 = vunpack.c.l.b16 %v539
    %v572 = vunpack.c.l.b16 %v540
    %v573 = vunpack.c.l.b16 %v541
    %v574 = vunpack.c.l.b16 %v542
    %v575 = vunpack.c.l.b16 %v543
    %v576 = vunpack.c.l.b16 %v544
    %v577 = vunpack.c.l.b16 %v545
    %v578 = vunpack.c.l.b16 %v546
    %v579 = vunpack.c.l.b16 %v547
    %v580 = vunpack.c.l.b16 %v548
    %v581 = vunpack.c.l.b16 %v549
    %v582 = vpack.c.b16 %v567, %v566
    %v583 = vpack.c.b16 %v569, %v568
    %v584 = vpack.c.b16 %v571, %v570
    %v585 = vpack.c.b16 %v573, %v572
    %v586 = vpack.c.b16 %v575, %v574
    %v587 = vpack.c.b16 %v577, %v576
    %v588 = vpack.c.b16 %v579, %v578
    %v589 = vpack.c.b16 %v581, %v580
    %598 = vmatprep.subr.bf16.mxu0 0
    %599 = vmatpush1.bf16.msra.mxu0 %v582
    %600 = vmatprep.subr.bf16.mxu0 0
    %601 = vmatpush1.bf16.msra.mxu0 %v583
    %602 = vmatprep.subr.bf16.mxu0 0
    %603 = vmatpush1.bf16.msra.mxu0 %v584
    %604 = vmatprep.subr.bf16.mxu0 0
    %605 = vmatpush1.bf16.msra.mxu0 %v585
    %606 = vmatprep.subr.bf16.mxu0 0
    %607 = vmatpush1.bf16.msra.mxu0 %v586
    %608 = vmatprep.subr.bf16.mxu0 0
    %609 = vmatpush1.bf16.msra.mxu0 %v587
    %610 = vmatprep.subr.bf16.mxu0 0
    %611 = vmatpush1.bf16.msra.mxu0 %v588
    %612 = vmatprep.subr.bf16.mxu0 0
    %613 = vmatpush1.bf16.msra.mxu0 %v589
    %614 = vmatprep.subr.bf16.mxu0 0
    %615 = vmatpush1.bf16.msra.mxu0 0
    %616 = vmatprep.subr.bf16.mxu0 0
    %617 = vmatpush1.bf16.msra.mxu0 0
    %618 = vmatprep.subr.bf16.mxu0 0
    %619 = vmatpush1.bf16.msra.mxu0 0
    %620 = vmatprep.subr.bf16.mxu0 0
    %621 = vmatpush1.bf16.msra.mxu0 0
    %622 = vmatprep.subr.bf16.mxu0 0
    %623 = vmatpush1.bf16.msra.mxu0 0
    %624 = vmatprep.subr.bf16.mxu0 0
    %625 = vmatpush1.bf16.msra.mxu0 0
    %626 = vmatprep.subr.bf16.mxu0 0
    %627 = vmatpush1.bf16.msra.mxu0 0
    %628 = vmatprep.subr.bf16.mxu0 0
    %629 = vmatpush1.bf16.msra.mxu0 0
    %630 = vmatprep.mubr.bf16.mxu0 0
    %631 = vmatmul.mubr.bf16.gmra.mrb[0].mxu0 %v526
    %v632 = vpop.f32.mrb[0].mxu0
    %v633 = vadd.f32 0.0, %v632
    %v634 = vpop.f32.mrb[0].mxu0
    %v635 = vpop.f32.mrb[0].mxu0
    %v636 = vadd.f32 0.0, %v635
    %v637 = vpop.f32.mrb[0].mxu0
    %638 = vmatprep.mubr.bf16.mxu0 0
    %639 = vmatmul.mubr.bf16.gmra.mrb[0].mxu0 %v527
    %v640 = vpop.f32.mrb[0].mxu0
    %v641 = vadd.f32 0.0, %v640
    %v642 = vpop.f32.mrb[0].mxu0
    %v643 = vpop.f32.mrb[0].mxu0
    %v644 = vadd.f32 0.0, %v643
    %v645 = vpop.f32.mrb[0].mxu0
    %646 = vmatprep.mubr.bf16.mxu0 0
    %647 = vmatmul.mubr.bf16.gmra.mrb[0].mxu0 %v528
    %v648 = vpop.f32.mrb[0].mxu0
    %v649 = vadd.f32 0.0, %v648
    %v650 = vpop.f32.mrb[0].mxu0
    %v651 = vpop.f32.mrb[0].mxu0
    %v652 = vadd.f32 0.0, %v651
    %v653 = vpop.f32.mrb[0].mxu0
    %654 = vmatprep.mubr.bf16.mxu0 0
    %655 = vmatmul.mubr.bf16.gmra.mrb[0].mxu0 %v529
    %v656 = vpop.f32.mrb[0].mxu0
    %v657 = vadd.f32 0.0, %v656
    %v658 = vpop.f32.mrb[0].mxu0
    %v659 = vpop.f32.mrb[0].mxu0
    %v660 = vadd.f32 0.0, %v659
    %v661 = vpop.f32.mrb[0].mxu0
    %662 = vmatprep.mubr.bf16.mxu0 0
    %663 = vmatmul.mubr.bf16.gmra.mrb[0].mxu0 %v530
    %v664 = vpop.f32.mrb[0].mxu0
    %v665 = vadd.f32 0.0, %v664
    %v666 = vpop.f32.mrb[0].mxu0
    %v667 = vpop.f32.mrb[0].mxu0
    %v668 = vadd.f32 0.0, %v667
    %v669 = vpop.f32.mrb[0].mxu0
    %670 = vmatprep.mubr.bf16.mxu0 0
    %671 = vmatmul.mubr.bf16.gmra.mrb[0].mxu0 %v531
    %v672 = vpop.f32.mrb[0].mxu0
    %v673 = vadd.f32 0.0, %v672
    %v674 = vpop.f32.mrb[0].mxu0
    %v675 = vpop.f32.mrb[0].mxu0
    %v676 = vadd.f32 0.0, %v675
    %v677 = vpop.f32.mrb[0].mxu0
    %678 = vmatprep.mubr.bf16.mxu0 0
    %679 = vmatmul.mubr.bf16.gmra.mrb[0].mxu0 %v532
    %v680 = vpop.f32.mrb[0].mxu0
    %v681 = vadd.f32 0.0, %v680
    %v682 = vpop.f32.mrb[0].mxu0
    %v683 = vpop.f32.mrb[0].mxu0
    %v684 = vadd.f32 0.0, %v683
    %v685 = vpop.f32.mrb[0].mxu0
    %686 = vmatprep.mubr.bf16.mxu0 0
    %687 = vmatmul.mubr.bf16.gmra.mrb[0].mxu0 %v533
    %v688 = vpop.f32.mrb[0].mxu0
    %v689 = vadd.f32 0.0, %v688
    %v690 = vpop.f32.mrb[0].mxu0
    %v691 = vpop.f32.mrb[0].mxu0
    %v692 = vadd.f32 0.0, %v691
    %v693 = vpop.f32.mrb[0].mxu0
    %694 = vdwg.mxu0
    %v695 = vpack.c.bf16 %v636, %v633
    %v696 = vpack.c.bf16 %v644, %v641
    %v697 = vpack.c.bf16 %v652, %v649
    %v698 = vpack.c.bf16 %v660, %v657
    %v699 = vpack.c.bf16 %v668, %v665
    %v700 = vpack.c.bf16 %v676, %v673
    %v701 = vpack.c.bf16 %v684, %v681
    %v702 = vpack.c.bf16 %v692, %v689
    %v711 = vunpack.c.l.b16 %v695
    %v712 = vunpack.c.h.b16 %v695
    %v713 = vunpack.c.l.b16 %v696
    %v714 = vunpack.c.h.b16 %v696
    %v715 = vunpack.c.l.b16 %v697
    %v716 = vunpack.c.h.b16 %v697
    %v717 = vunpack.c.l.b16 %v698
    %v718 = vunpack.c.h.b16 %v698
    %v719 = vunpack.c.l.b16 %v699
    %v720 = vunpack.c.h.b16 %v699
    %v721 = vunpack.c.l.b16 %v700
    %v722 = vunpack.c.h.b16 %v700
    %v723 = vunpack.c.l.b16 %v701
    %v724 = vunpack.c.h.b16 %v701
    %v725 = vunpack.c.l.b16 %v702
    %v726 = vunpack.c.h.b16 %v702
    %v727 = vpack.c.b16 %v711, %v711
    %v728 = vpack.c.b16 %v712, %v712
    %v729 = vpack.c.b16 %v713, %v713
    %v730 = vpack.c.b16 %v714, %v714
    %v731 = vpack.c.b16 %v715, %v715
    %v732 = vpack.c.b16 %v716, %v716
    %v733 = vpack.c.b16 %v717, %v717
    %v734 = vpack.c.b16 %v718, %v718
    %v735 = vpack.c.b16 %v719, %v719
    %v736 = vpack.c.b16 %v720, %v720
    %v737 = vpack.c.b16 %v721, %v721
    %v738 = vpack.c.b16 %v722, %v722
    %v739 = vpack.c.b16 %v723, %v723
    %v740 = vpack.c.b16 %v724, %v724
    %v741 = vpack.c.b16 %v725, %v725
    %v742 = vpack.c.b16 %v726, %v726
    %759 = vst [vmem:[#allocation8] sm:$0xf] %v727
    %760 = vst [vmem:[#allocation8 + $0x4] sm:$0xf] %v728
    %761 = vst [vmem:[#allocation8 + $0x8] sm:$0xf] %v729
    %762 = vst [vmem:[#allocation8 + $0xc] sm:$0xf] %v730
    %763 = vst [vmem:[#allocation8 + $0x10] sm:$0xf] %v731
    %764 = vst [vmem:[#allocation8 + $0x14] sm:$0xf] %v732
    %765 = vst [vmem:[#allocation8 + $0x18] sm:$0xf] %v733
    %766 = vst [vmem:[#allocation8 + $0x1c] sm:$0xf] %v734
    %767 = vst [vmem:[#allocation8 + $0x20] sm:$0xf] %v735
    %768 = vst [vmem:[#allocation8 + $0x24] sm:$0xf] %v736
    %769 = vst [vmem:[#allocation8 + $0x28] sm:$0xf] %v737
    %770 = vst [vmem:[#allocation8 + $0x2c] sm:$0xf] %v738
    %771 = vst [vmem:[#allocation8 + $0x30] sm:$0xf] %v739
    %772 = vst [vmem:[#allocation8 + $0x34] sm:$0xf] %v740
    %773 = vst [vmem:[#allocation8 + $0x38] sm:$0xf] %v741
    %774 = vst [vmem:[#allocation8 + $0x3c] sm:$0xf] %v742
    // Predicated region
    $region26: #{tpu_custom_call.1} parent=1 // pred_check
      _
    $region27: #{tpu_custom_call.1} parent=1 // pred_check_branch
      %776 = sbr.rel (0) target = $region29
    $region28: #{tpu_custom_call.1} parent=1 // pred_region
      %s778 = ssub.s32 1024, 1024
      %779 = vsyncadd [#allocation4], %s778
      %s780 = sshll.u32 [#allocation8], 4
      %s781 = int_to_ptr.vmem [resolvable:$true] %s780
      %786 = dma.vmem_to_hbm [thread:$0]  %s781, 1024, %s3, [#allocation4], 64, 64, 4
    $region29: #{tpu_custom_call.1} parent=1 // pred_fallthru
      _
    // Predicated region
    $region30: #{tpu_custom_call.1} parent=1 // pred_check
      _
    $region31: #{tpu_custom_call.1} parent=1 // pred_check_branch
      %788 = sbr.rel (0) target = $region33
    $region32: #{tpu_custom_call.1} parent=1 // pred_region
      %789 = dma.done [#allocation4], 1024
    $region33: #{tpu_custom_call.1} parent=1 // pred_fallthru
      _
    %790 = vsyncpa [#allocation3], 1
    %791 = vsyncpa [#allocation6], 1
    %792 = vsyncpa [#allocation4], 1

</llo_original>
